<compile_context>
chip_gen: v7x
topology: tpu7x:2x2x1
jax: 0.10.0
libtpu: 0.0.40
codegen_flags: <defaults>
</compile_context>

<pallas_src>
import functools

import jax
import jax.numpy as jnp
from jax import lax
from jax.experimental import pallas as pl
from jax.experimental.pallas import tpu as pltpu

# Scoped-VMEM budget: sized against v7x's 64 MiB physical VMEM with ~25% headroom;
# also raises the 16/32 MiB scoped defaults on v5e/v6e so larger tiles can be used.
_VMEM_LIMIT_BYTES = 48 * 1024 * 1024


# ---------------------------------------------------------------------------
# Kernel 1 & 3: row-tiled Linear  y = x @ W + b  (weight fully VMEM-resident).
# ---------------------------------------------------------------------------
def _linear_kernel(x_ref, w_ref, b_ref, o_ref):
    acc = jnp.dot(x_ref[...], w_ref[...], preferred_element_type=jnp.float32)
    o_ref[...] = (acc + b_ref[...]).astype(o_ref.dtype)


def _linear(x2d, w, b, *, out_dtype, block_rows=512):
    m, k = x2d.shape
    kw, n = w.shape
    assert k == kw
    bm = m if m <= block_rows else block_rows          # full dim at small shapes
    return pl.pallas_call(
        _linear_kernel,
        out_shape=jax.ShapeDtypeStruct((m, n), out_dtype),
        grid_spec=pltpu.PrefetchScalarGridSpec(
            num_scalar_prefetch=0,
            grid=(pl.cdiv(m, bm),),
            in_specs=[
                pl.BlockSpec((bm, k), lambda i: (i, 0)),
                pl.BlockSpec((k, n), lambda i: (0, 0)),     # resident weight
                pl.BlockSpec((1, n), lambda i: (0, 0)),     # resident bias
            ],
            out_specs=pl.BlockSpec((bm, n), lambda i: (i, 0)),
        ),
        compiler_params=pltpu.CompilerParams(
            dimension_semantics=("parallel",),
            vmem_limit_bytes=_VMEM_LIMIT_BYTES),
    )(x2d, w, b)


# ---------------------------------------------------------------------------
# Kernel 2: flash attention with online softmax and deferred normalisation.
# Grid = (B*H, num_q_tiles, num_kv_tiles); kv axis innermost / "arbitrary".
# ---------------------------------------------------------------------------
def _flash_kernel(q_ref, k_ref, v_ref, o_ref, m_scr, l_scr, acc_scr, *,
                  scale, kv_len, block_k, mask_kv):
    ki = pl.program_id(2)

    @pl.when(ki == 0)
    def _():
        m_scr[...] = jnp.full_like(m_scr, -jnp.inf)
        l_scr[...] = jnp.zeros_like(l_scr)
        acc_scr[...] = jnp.zeros_like(acc_scr)

    # q @ k^T without materialising a transpose of K (contract last dims).
    s = lax.dot_general(q_ref[...], k_ref[...], (((1,), (1,)), ((), ())),
                        preferred_element_type=jnp.float32)        # (Tq, Tk) f32

    if mask_kv:  # only emitted when N % block_k != 0
        col = ki * block_k + lax.broadcasted_iota(jnp.int32, s.shape, 1)
        s = jnp.where(col < kv_len, s, -jnp.inf)

    # f32 online softmax statistics.  NOTE: the module applies NO pre-softmax
    # scale; the max-subtraction is what keeps exp() in range.
    m_prev = m_scr[...]
    m_new = jnp.maximum(m_prev, jnp.max(s, axis=-1, keepdims=True))
    alpha = jnp.exp(m_prev - m_new)
    e = jnp.exp(s - m_new)
    l_scr[...] = alpha * l_scr[...] + jnp.sum(e, axis=-1, keepdims=True)
    # Deferred normalisation: multiply UNNORMALISED e into v; normalise the
    # (Tq, d) accumulator in the epilogue instead of the (Tq, Tk) probabilities.
    acc_scr[...] = alpha * acc_scr[...] + jnp.dot(
        e.astype(v_ref.dtype), v_ref[...], preferred_element_type=jnp.float32)
    m_scr[...] = m_new

    @pl.when(ki == pl.num_programs(2) - 1)
    def _():
        # The module scales AFTER the softmax by 1/sqrt(emb_size) (not the usual
        # pre-softmax 1/sqrt(head_dim)); fold it into the single normalisation.
        inv = pl.reciprocal(l_scr[...], approx=True) * scale
        o_ref[...] = (acc_scr[...] * inv).astype(o_ref.dtype)


def _flash_attention(q, k, v, *, scale, out_dtype, block_q=256, block_k=256):
    bh, nq, d = q.shape
    _, nk, _ = k.shape
    bq = nq if nq <= block_q else block_q
    bk = nk if nk <= block_k else block_k
    kernel = functools.partial(_flash_kernel, scale=scale, kv_len=nk,
                               block_k=bk, mask_kv=(nk % bk != 0))
    return pl.pallas_call(
        kernel,
        out_shape=jax.ShapeDtypeStruct((bh, nq, d), out_dtype),
        grid_spec=pltpu.PrefetchScalarGridSpec(
            num_scalar_prefetch=0,
            grid=(bh, pl.cdiv(nq, bq), pl.cdiv(nk, bk)),
            in_specs=[
                pl.BlockSpec((None, bq, d), lambda b, qi, ki: (b, qi, 0)),
                pl.BlockSpec((None, bk, d), lambda b, qi, ki: (b, ki, 0)),
                pl.BlockSpec((None, bk, d), lambda b, qi, ki: (b, ki, 0)),
            ],
            out_specs=pl.BlockSpec((None, bq, d), lambda b, qi, ki: (b, qi, 0)),
            scratch_shapes=[
                pltpu.VMEM((bq, 1), jnp.float32),   # running max m
                pltpu.VMEM((bq, 1), jnp.float32),   # running sum l
                pltpu.VMEM((bq, d), jnp.float32),   # output accumulator
            ],
        ),
        compiler_params=pltpu.CompilerParams(
            # batch*head and query tiles are independent -> megacore-splittable;
            # the kv axis carries the online-softmax state -> must stay arbitrary.
            dimension_semantics=("parallel", "parallel", "arbitrary"),
            vmem_limit_bytes=_VMEM_LIMIT_BYTES),
    )(q, k, v)


# ---------------------------------------------------------------------------
# Wrapper: QKV projection -> head split (layout plumbing) -> flash attention
#          -> head merge (layout plumbing) -> output projection.
# ---------------------------------------------------------------------------
def multi_head_attention(x, params, *, emb_size, heads,
                         matmul_dtype=jnp.bfloat16,
                         block_rows=512, block_q=256, block_k=256):
    """x: (B, N, E).  params: dict of pre-transposed Linear weights/biases.

    matmul_dtype: dtype of MXU operands (bf16 by default on all TPU generations;
    softmax statistics and all accumulation stay float32).
    """
    B, N, E = x.shape
    assert E == emb_size and E % heads == 0
    d = E // heads
    md = matmul_dtype

    # Host/XLA-side packing (layout plumbing, done once): fused QKV weight.
    w_qkv = jnp.concatenate(
        [params["wq"], params["wk"], params["wv"]], axis=1).astype(md)   # (E, 3E)
    b_qkv = jnp.concatenate(
        [params["bq"], params["bk"], params["bv"]], axis=1).astype(jnp.float32)
    w_p = params["wp"].astype(md)
    b_p = params["bp"].astype(jnp.float32)

    # Pre-cast x once at the boundary (no per-step casts inside the kernels).
    x2d = x.reshape(B * N, E).astype(md)

    # 1) Fused QKV projection: one deep (contraction E) lane-dense (3E) matmul.
    qkv = _linear(x2d, w_qkv, b_qkv, out_dtype=md, block_rows=block_rows)

    # Head split -- wrapper-side reshape/transpose is layout plumbing.
    qkv = qkv.reshape(B, N, 3, heads, d)
    q = qkv[:, :, 0].transpose(0, 2, 1, 3).reshape(B * heads, N, d)
    k = qkv[:, :, 1].transpose(0, 2, 1, 3).reshape(B * heads, N, d)
    v = qkv[:, :, 2].transpose(0, 2, 1, 3).reshape(B * heads, N, d)

    # 2) Flash attention (post-softmax 1/sqrt(emb_size), per the module).
    scale = 1.0 / float(emb_size) ** 0.5
    o = _flash_attention(q, k, v, scale=scale, out_dtype=md,
                         block_q=block_q, block_k=block_k)           # (B*H, N, d)

    # Head merge (layout plumbing) + 3) single deep output projection.
    o = o.reshape(B, heads, N, d).transpose(0, 2, 1, 3).reshape(B * N, E)
    y = _linear(o, w_p, b_p, out_dtype=x.dtype, block_rows=block_rows)
    return y.reshape(B, N, E)


# ---------------------------------------------------------------------------
# Pure-JAX reference mirroring the PyTorch module exactly.
# ---------------------------------------------------------------------------
def _reference(x, params, *, emb_size, heads):
    B, N, E = x.shape
    d = E // heads

    def lin(t, w, b):
        return t @ w + b  # w already (E_in, E_out)

    q = lin(x, params["wq"], params["bq"]).reshape(B, N, heads, d).transpose(0, 2, 1, 3)
    k = lin(x, params["wk"], params["bk"]).reshape(B, N, heads, d).transpose(0, 2, 1, 3)
    v = lin(x, params["wv"], params["bv"]).reshape(B, N, heads, d).transpose(0, 2, 1, 3)

    s = jnp.einsum("bhqd,bhkd->bhqk", q, k)
    p = jax.nn.softmax(s, axis=-1) / (emb_size ** 0.5)
    o = jnp.einsum("bhal,bhlv->bhav", p, v)
    o = o.transpose(0, 2, 1, 3).reshape(B, N, E)
    return lin(o, params["wp"], params["bp"])


if __name__ == "__main__":
    B, N, EMB, HEADS = 2, 16, 32, 4   # small shapes consistent with the module

    key = jax.random.PRNGKey(0)
    keys = jax.random.split(key, 9)

    def init_linear(kw, kb, fan_in, fan_out):
        bound = 1.0 / (fan_in ** 0.5)
        w = jax.random.uniform(kw, (fan_in, fan_out), jnp.float32, -bound, bound)
        b = jax.random.uniform(kb, (1, fan_out), jnp.float32, -bound, bound)
        return w, b

    wq, bq = init_linear(keys[0], keys[1], EMB, EMB)
    wk, bk = init_linear(keys[2], keys[3], EMB, EMB)
    wv, bv = init_linear(keys[4], keys[5], EMB, EMB)
    wp, bp = init_linear(keys[6], keys[7], EMB, EMB)
    params = dict(wq=wq, bq=bq, wk=wk, bk=bk, wv=wv, bv=bv, wp=wp, bp=bp)

    x = jax.random.normal(keys[8], (B, N, EMB), jnp.float32)

    ref = _reference(x, params, emb_size=EMB, heads=HEADS)

    # f32 MXU-operand path: close check (approx reciprocal on the EUP -> ~1e-3).
    mha_f32 = jax.jit(functools.partial(multi_head_attention, emb_size=EMB,
                                        heads=HEADS, matmul_dtype=jnp.float32))
    out_f32 = jax.block_until_ready(mha_f32(x, params))
    assert out_f32.shape == (B, N, EMB)
    err_f32 = float(jnp.max(jnp.abs(out_f32 - ref)))
    assert err_f32 < 2e-2, err_f32

    # Default bf16 MXU-operand path (all generations): f32 accumulation/softmax.
    mha_bf16 = jax.jit(functools.partial(multi_head_attention, emb_size=EMB,
                                         heads=HEADS))
    out_bf16 = jax.block_until_ready(mha_bf16(x, params))
    assert out_bf16.shape == (B, N, EMB)
    assert bool(jnp.all(jnp.isfinite(out_bf16)))
    err_bf16 = float(jnp.max(jnp.abs(out_bf16 - ref)))
    assert err_bf16 < 0.3, err_bf16

    print("KERNEL_OK")
</pallas_src>

<mosaic_0001>
module attributes {stable_mosaic.version = 11 : i64} {
  func.func @_linear_kernel(%arg0: i32, %arg1: memref<32x32xf32, #tpu.memory_space<vmem>>, %arg2: memref<32x96xf32, #tpu.memory_space<vmem>>, %arg3: memref<1x96xf32, #tpu.memory_space<vmem>>, %arg4: memref<32x96xf32, #tpu.memory_space<vmem>>) attributes {dimension_semantics = [#tpu.dimension_semantics<parallel>], iteration_bounds = array<i64: 1>, scalar_prefetch = 0 : i64, scratch_operands = 0 : i64, tpu.core_type = #tpu.core_type<tc>, window_params = [{transform_indices = @transform_0, window_bounds = array<i64: 32, 32>}, {pipeline_mode = #tpu.pipeline_mode<synchronous>, transform_indices = @transform_1, window_bounds = array<i64: 32, 96>}, {pipeline_mode = #tpu.pipeline_mode<synchronous>, transform_indices = @transform_2, window_bounds = array<i64: 1, 96>}, {transform_indices = @transform_3, window_bounds = array<i64: 32, 96>}]} {
    %c0 = arith.constant 0 : index
    %c0_0 = arith.constant 0 : index
    %0 = vector.load %arg1[%c0, %c0_0] : memref<32x32xf32, #tpu.memory_space<vmem>>, vector<32x32xf32>
    %c0_1 = arith.constant 0 : index
    %c0_2 = arith.constant 0 : index
    %1 = vector.load %arg2[%c0_1, %c0_2] : memref<32x96xf32, #tpu.memory_space<vmem>>, vector<32x96xf32>
    %cst = arith.constant dense<0.000000e+00> : vector<32x96xf32>
    %2 = tpu.matmul %0, %1, %cst {dimension_numbers = #tpu.dot_dimension_numbers<[1], [0], [0], [1], [0, 0, 1, 1], [], []>} : vector<32x32xf32>, vector<32x96xf32>, vector<32x96xf32> -> vector<32x96xf32>
    %c0_3 = arith.constant 0 : index
    %c0_4 = arith.constant 0 : index
    %3 = vector.load %arg3[%c0_3, %c0_4] : memref<1x96xf32, #tpu.memory_space<vmem>>, vector<1x96xf32>
    %4 = vector.broadcast %3 : vector<1x96xf32> to vector<32x96xf32>
    %5 = arith.addf %2, %4 : vector<32x96xf32>
    %c0_5 = arith.constant 0 : index
    %c0_6 = arith.constant 0 : index
    %6 = vector.load %arg4[%c0_5, %c0_6] : memref<32x96xf32, #tpu.memory_space<vmem>>, vector<32x96xf32>
    tpu.vector_store %arg4[%c0_5, %c0_6], %5 {strides = array<i32>} : memref<32x96xf32, #tpu.memory_space<vmem>>, vector<32x96xf32>,
    return
  }
  func.func @transform_0(%arg0: i32) -> (i32, i32) {
    %c0_i32 = arith.constant 0 : i32
    %c0_i32_0 = arith.constant 0 : i32
    return %arg0, %c0_i32 : i32, i32
  }
  func.func @transform_1(%arg0: i32) -> (i32, i32) {
    %c0_i32 = arith.constant 0 : i32
    %c0_i32_0 = arith.constant 0 : i32
    %c0_i32_1 = arith.constant 0 : i32
    return %c0_i32, %c0_i32_0 : i32, i32
  }
  func.func @transform_2(%arg0: i32) -> (i32, i32) {
    %c0_i32 = arith.constant 0 : i32
    %c0_i32_0 = arith.constant 0 : i32
    %c0_i32_1 = arith.constant 0 : i32
    return %c0_i32, %c0_i32_0 : i32, i32
  }
  func.func @transform_3(%arg0: i32) -> (i32, i32) {
    %c0_i32 = arith.constant 0 : i32
    %c0_i32_0 = arith.constant 0 : i32
    return %arg0, %c0_i32 : i32, i32
  }
}

module attributes {stable_mosaic.version = 11 : i64} {
  func.func @_flash_kernel(%arg0: i32, %arg1: i32, %arg2: i32, %arg3: memref<1x16x8xf32, #tpu.memory_space<vmem>>, %arg4: memref<1x16x8xf32, #tpu.memory_space<vmem>>, %arg5: memref<1x16x8xf32, #tpu.memory_space<vmem>>, %arg6: memref<1x16x8xf32, #tpu.memory_space<vmem>>, %arg7: memref<16x1xf32, #tpu.memory_space<vmem>>, %arg8: memref<16x1xf32, #tpu.memory_space<vmem>>, %arg9: memref<16x8xf32, #tpu.memory_space<vmem>>) attributes {dimension_semantics = [#tpu.dimension_semantics<parallel>, #tpu.dimension_semantics<parallel>, #tpu.dimension_semantics<arbitrary>], iteration_bounds = array<i64: 8, 1, 1>, scalar_prefetch = 0 : i64, scratch_operands = 3 : i64, tpu.core_type = #tpu.core_type<tc>, window_params = [{transform_indices = @transform_0, window_bounds = array<i64: 1, 16, 8>}, {transform_indices = @transform_1, window_bounds = array<i64: 1, 16, 8>}, {transform_indices = @transform_2, window_bounds = array<i64: 1, 16, 8>}, {transform_indices = @transform_3, window_bounds = array<i64: 1, 16, 8>}]} {
    %c0_i32 = arith.constant 0 : i32
    %0 = arith.cmpi eq, %arg2, %c0_i32 : i32
    %1 = arith.extui %0 : i1 to i32
    %c0_i32_0 = arith.constant 0 : i32
    %2 = arith.cmpi ne, %1, %c0_i32_0 : i32
    scf.if %2 {
      %cst_26 = arith.constant 0xFF800000 : f32
      %35 = vector.broadcast %cst_26 : f32 to vector<16x1xf32>
      %c0_27 = arith.constant 0 : index
      %c0_28 = arith.constant 0 : index
      %36 = vector.load %arg7[%c0_27, %c0_28] : memref<16x1xf32, #tpu.memory_space<vmem>>, vector<16x1xf32>
      tpu.vector_store %arg7[%c0_27, %c0_28], %35 {strides = array<i32>} : memref<16x1xf32, #tpu.memory_space<vmem>>, vector<16x1xf32>,
      %cst_29 = arith.constant 0.000000e+00 : f32
      %37 = vector.broadcast %cst_29 : f32 to vector<16x1xf32>
      %c0_30 = arith.constant 0 : index
      %c0_31 = arith.constant 0 : index
      %38 = vector.load %arg8[%c0_30, %c0_31] : memref<16x1xf32, #tpu.memory_space<vmem>>, vector<16x1xf32>
      tpu.vector_store %arg8[%c0_30, %c0_31], %37 {strides = array<i32>} : memref<16x1xf32, #tpu.memory_space<vmem>>, vector<16x1xf32>,
      %cst_32 = arith.constant 0.000000e+00 : f32
      %39 = vector.broadcast %cst_32 : f32 to vector<16x8xf32>
      %c0_33 = arith.constant 0 : index
      %c0_34 = arith.constant 0 : index
      %40 = vector.load %arg9[%c0_33, %c0_34] : memref<16x8xf32, #tpu.memory_space<vmem>>, vector<16x8xf32>
      tpu.vector_store %arg9[%c0_33, %c0_34], %39 {strides = array<i32>} : memref<16x8xf32, #tpu.memory_space<vmem>>, vector<16x8xf32>,
    } else {
    }
    %c0 = arith.constant 0 : index
    %c0_1 = arith.constant 0 : index
    %c0_2 = arith.constant 0 : index
    %3 = vector.load %arg3[%c0, %c0_1, %c0_2] : memref<1x16x8xf32, #tpu.memory_space<vmem>>, vector<1x16x8xf32>
    %4 = vector.shape_cast %3 : vector<1x16x8xf32> to vector<16x8xf32>
    %c0_3 = arith.constant 0 : index
    %c0_4 = arith.constant 0 : index
    %c0_5 = arith.constant 0 : index
    %5 = vector.load %arg4[%c0_3, %c0_4, %c0_5] : memref<1x16x8xf32, #tpu.memory_space<vmem>>, vector<1x16x8xf32>
    %6 = vector.shape_cast %5 : vector<1x16x8xf32> to vector<16x8xf32>
    %cst = arith.constant dense<0.000000e+00> : vector<16x16xf32>
    %7 = tpu.matmul %4, %6, %cst {dimension_numbers = #tpu.dot_dimension_numbers<[1], [1], [0], [0], [0, 0, 1, 0], [], []>} : vector<16x8xf32>, vector<16x8xf32>, vector<16x16xf32> -> vector<16x16xf32>
    %c0_6 = arith.constant 0 : index
    %c0_7 = arith.constant 0 : index
    %8 = vector.load %arg7[%c0_6, %c0_7] : memref<16x1xf32, #tpu.memory_space<vmem>>, vector<16x1xf32>
    %cst_8 = arith.constant dense<0xFF800000> : vector<16xf32>
    %9 = vector.multi_reduction <maximumf>, %7, %cst_8 [1] : vector<16x16xf32> to vector<16xf32>
    %10 = vector.shape_cast %9 : vector<16xf32> to vector<16x1xf32>
    %11 = arith.maximumf %8, %10 : vector<16x1xf32>
    %12 = arith.subf %8, %11 : vector<16x1xf32>
    %13 = math.exp %12 : vector<16x1xf32>
    %14 = vector.broadcast %11 : vector<16x1xf32> to vector<16x16xf32>
    %15 = arith.subf %7, %14 : vector<16x16xf32>
    %16 = math.exp %15 : vector<16x16xf32>
    %c0_9 = arith.constant 0 : index
    %c0_10 = arith.constant 0 : index
    %17 = vector.load %arg8[%c0_9, %c0_10] : memref<16x1xf32, #tpu.memory_space<vmem>>, vector<16x1xf32>
    %18 = arith.mulf %13, %17 : vector<16x1xf32>
    %cst_11 = arith.constant dense<0.000000e+00> : vector<16xf32>
    %19 = vector.multi_reduction <add>, %16, %cst_11 [1] : vector<16x16xf32> to vector<16xf32>
    %20 = vector.shape_cast %19 : vector<16xf32> to vector<16x1xf32>
    %21 = arith.addf %18, %20 : vector<16x1xf32>
    %c0_12 = arith.constant 0 : index
    %c0_13 = arith.constant 0 : index
    %22 = vector.load %arg8[%c0_12, %c0_13] : memref<16x1xf32, #tpu.memory_space<vmem>>, vector<16x1xf32>
    tpu.vector_store %arg8[%c0_12, %c0_13], %21 {strides = array<i32>} : memref<16x1xf32, #tpu.memory_space<vmem>>, vector<16x1xf32>,
    %c0_14 = arith.constant 0 : index
    %c0_15 = arith.constant 0 : index
    %23 = vector.load %arg9[%c0_14, %c0_15] : memref<16x8xf32, #tpu.memory_space<vmem>>, vector<16x8xf32>
    %24 = vector.broadcast %13 : vector<16x1xf32> to vector<16x8xf32>
    %25 = arith.mulf %24, %23 : vector<16x8xf32>
    %c0_16 = arith.constant 0 : index
    %c0_17 = arith.constant 0 : index
    %c0_18 = arith.constant 0 : index
    %26 = vector.load %arg5[%c0_16, %c0_17, %c0_18] : memref<1x16x8xf32, #tpu.memory_space<vmem>>, vector<1x16x8xf32>
    %27 = vector.shape_cast %26 : vector<1x16x8xf32> to vector<16x8xf32>
    %cst_19 = arith.constant dense<0.000000e+00> : vector<16x8xf32>
    %28 = tpu.matmul %16, %27, %cst_19 {dimension_numbers = #tpu.dot_dimension_numbers<[1], [0], [0], [1], [0, 0, 1, 1], [], []>} : vector<16x16xf32>, vector<16x8xf32>, vector<16x8xf32> -> vector<16x8xf32>
    %29 = arith.addf %25, %28 : vector<16x8xf32>
    %c0_20 = arith.constant 0 : index
    %c0_21 = arith.constant 0 : index
    %30 = vector.load %arg9[%c0_20, %c0_21] : memref<16x8xf32, #tpu.memory_space<vmem>>, vector<16x8xf32>
    tpu.vector_store %arg9[%c0_20, %c0_21], %29 {strides = array<i32>} : memref<16x8xf32, #tpu.memory_space<vmem>>, vector<16x8xf32>,
    %c0_22 = arith.constant 0 : index
    %c0_23 = arith.constant 0 : index
    %31 = vector.load %arg7[%c0_22, %c0_23] : memref<16x1xf32, #tpu.memory_space<vmem>>, vector<16x1xf32>
    tpu.vector_store %arg7[%c0_22, %c0_23], %11 {strides = array<i32>} : memref<16x1xf32, #tpu.memory_space<vmem>>, vector<16x1xf32>,
    %c0_i32_24 = arith.constant 0 : i32
    %32 = arith.cmpi eq, %arg2, %c0_i32_24 : i32
    %33 = arith.extui %32 : i1 to i32
    %c0_i32_25 = arith.constant 0 : i32
    %34 = arith.cmpi ne, %33, %c0_i32_25 : i32
    scf.if %34 {
      %c0_26 = arith.constant 0 : index
      %c0_27 = arith.constant 0 : index
      %35 = vector.load %arg8[%c0_26, %c0_27] : memref<16x1xf32, #tpu.memory_space<vmem>>, vector<16x1xf32>
      %36 = tpu.reciprocal %35 {approx = true} : vector<16x1xf32> -> vector<16x1xf32>
      %cst_28 = arith.constant 0.176776692 : f32
      %37 = vector.broadcast %cst_28 : f32 to vector<16x1xf32>
      %38 = arith.mulf %36, %37 : vector<16x1xf32>
      %c0_29 = arith.constant 0 : index
      %c0_30 = arith.constant 0 : index
      %39 = vector.load %arg9[%c0_29, %c0_30] : memref<16x8xf32, #tpu.memory_space<vmem>>, vector<16x8xf32>
      %40 = vector.broadcast %38 : vector<16x1xf32> to vector<16x8xf32>
      %41 = arith.mulf %39, %40 : vector<16x8xf32>
      %c0_31 = arith.constant 0 : index
      %c0_32 = arith.constant 0 : index
      %c0_33 = arith.constant 0 : index
      %42 = vector.load %arg6[%c0_31, %c0_32, %c0_33] : memref<1x16x8xf32, #tpu.memory_space<vmem>>, vector<1x16x8xf32>
      %43 = vector.shape_cast %42 : vector<1x16x8xf32> to vector<16x8xf32>
      %44 = vector.shape_cast %41 : vector<16x8xf32> to vector<1x16x8xf32>
      tpu.vector_store %arg6[%c0_31, %c0_32, %c0_33], %44 {strides = array<i32>} : memref<1x16x8xf32, #tpu.memory_space<vmem>>, vector<1x16x8xf32>,
    } else {
    }
    return
  }
  func.func @transform_0(%arg0: i32, %arg1: i32, %arg2: i32) -> (i32, i32, i32) {
    %c0_i32 = arith.constant 0 : i32
    %c0_i32_0 = arith.constant 0 : i32
    return %arg0, %arg1, %c0_i32 : i32, i32, i32
  }
  func.func @transform_1(%arg0: i32, %arg1: i32, %arg2: i32) -> (i32, i32, i32) {
    %c0_i32 = arith.constant 0 : i32
    %c0_i32_0 = arith.constant 0 : i32
    return %arg0, %arg2, %c0_i32 : i32, i32, i32
  }
  func.func @transform_2(%arg0: i32, %arg1: i32, %arg2: i32) -> (i32, i32, i32) {
    %c0_i32 = arith.constant 0 : i32
    %c0_i32_0 = arith.constant 0 : i32
    return %arg0, %arg2, %c0_i32 : i32, i32, i32
  }
  func.func @transform_3(%arg0: i32, %arg1: i32, %arg2: i32) -> (i32, i32, i32) {
    %c0_i32 = arith.constant 0 : i32
    %c0_i32_0 = arith.constant 0 : i32
    return %arg0, %arg1, %c0_i32 : i32, i32, i32
  }
}

module attributes {stable_mosaic.version = 11 : i64} {
  func.func @_linear_kernel(%arg0: i32, %arg1: memref<32x32xf32, #tpu.memory_space<vmem>>, %arg2: memref<32x32xf32, #tpu.memory_space<vmem>>, %arg3: memref<1x32xf32, #tpu.memory_space<vmem>>, %arg4: memref<32x32xf32, #tpu.memory_space<vmem>>) attributes {dimension_semantics = [#tpu.dimension_semantics<parallel>], iteration_bounds = array<i64: 1>, scalar_prefetch = 0 : i64, scratch_operands = 0 : i64, tpu.core_type = #tpu.core_type<tc>, window_params = [{transform_indices = @transform_0, window_bounds = array<i64: 32, 32>}, {pipeline_mode = #tpu.pipeline_mode<synchronous>, transform_indices = @transform_1, window_bounds = array<i64: 32, 32>}, {pipeline_mode = #tpu.pipeline_mode<synchronous>, transform_indices = @transform_2, window_bounds = array<i64: 1, 32>}, {transform_indices = @transform_3, window_bounds = array<i64: 32, 32>}]} {
    %c0 = arith.constant 0 : index
    %c0_0 = arith.constant 0 : index
    %0 = vector.load %arg1[%c0, %c0_0] : memref<32x32xf32, #tpu.memory_space<vmem>>, vector<32x32xf32>
    %c0_1 = arith.constant 0 : index
    %c0_2 = arith.constant 0 : index
    %1 = vector.load %arg2[%c0_1, %c0_2] : memref<32x32xf32, #tpu.memory_space<vmem>>, vector<32x32xf32>
    %cst = arith.constant dense<0.000000e+00> : vector<32x32xf32>
    %2 = tpu.matmul %0, %1, %cst {dimension_numbers = #tpu.dot_dimension_numbers<[1], [0], [0], [1], [0, 0, 1, 1], [], []>} : vector<32x32xf32>, vector<32x32xf32>, vector<32x32xf32> -> vector<32x32xf32>
    %c0_3 = arith.constant 0 : index
    %c0_4 = arith.constant 0 : index
    %3 = vector.load %arg3[%c0_3, %c0_4] : memref<1x32xf32, #tpu.memory_space<vmem>>, vector<1x32xf32>
    %4 = vector.broadcast %3 : vector<1x32xf32> to vector<32x32xf32>
    %5 = arith.addf %2, %4 : vector<32x32xf32>
    %c0_5 = arith.constant 0 : index
    %c0_6 = arith.constant 0 : index
    %6 = vector.load %arg4[%c0_5, %c0_6] : memref<32x32xf32, #tpu.memory_space<vmem>>, vector<32x32xf32>
    tpu.vector_store %arg4[%c0_5, %c0_6], %5 {strides = array<i32>} : memref<32x32xf32, #tpu.memory_space<vmem>>, vector<32x32xf32>,
    return
  }
  func.func @transform_0(%arg0: i32) -> (i32, i32) {
    %c0_i32 = arith.constant 0 : i32
    %c0_i32_0 = arith.constant 0 : i32
    return %arg0, %c0_i32 : i32, i32
  }
  func.func @transform_1(%arg0: i32) -> (i32, i32) {
    %c0_i32 = arith.constant 0 : i32
    %c0_i32_0 = arith.constant 0 : i32
    %c0_i32_1 = arith.constant 0 : i32
    return %c0_i32, %c0_i32_0 : i32, i32
  }
  func.func @transform_2(%arg0: i32) -> (i32, i32) {
    %c0_i32 = arith.constant 0 : i32
    %c0_i32_0 = arith.constant 0 : i32
    %c0_i32_1 = arith.constant 0 : i32
    return %c0_i32, %c0_i32_0 : i32, i32
  }
  func.func @transform_3(%arg0: i32) -> (i32, i32) {
    %c0_i32 = arith.constant 0 : i32
    %c0_i32_0 = arith.constant 0 : i32
    return %arg0, %c0_i32 : i32, i32
  }
}

</mosaic_0001>

<llo_original>
// kernel: multi_head_attention.3
$region0: #{multi_head_attention.3}
  #allocation0 [shape = 'u32[]', space=smem, size = 0x4, offset = 0x4, fixed_abs, tag = 'smem constant byte address 0x4 - core index']
  #allocation1 [shape = 'u32[144,128]{1,0:T(1,128)}', space=vmem, size = 0x12000, scoped, tag = 'internal scratch']
  %s0 = inlined_call_operand.vmem [shape: f32[32,32], index: 0, kind: input, shape index: {}]
  %s1 = inlined_call_operand.vmem [shape: f32[32,96], index: 1, kind: input, shape index: {}]
  %s2 = inlined_call_operand.vmem [shape: f32[1,96], index: 2, kind: input, shape index: {}]
  %s3 = inlined_call_operand.vmem [shape: f32[32,96], index: 3, kind: output, shape index: {}]
  %s4 = sld [smem:[#allocation0]]
  $region22: #{multi_head_attention.3} parent=0
    _
  %s6 = ssub.s32 1, %s4
  %s7 = scalar_select 0, %s6, %s4
  // Predicated region
  $region2: #{multi_head_attention.3} parent=0 // pred_check
    _
  $region3: #{multi_head_attention.3} parent=0 // pred_check_branch
    %9 = sbr.rel (0) target = $region5
  $region4: #{multi_head_attention.3} parent=0 // pred_region
    _
  $region5: #{multi_head_attention.3} parent=0 // pred_fallthru
    _
  // Predicated region
  $region6: #{multi_head_attention.3} parent=0 // pred_check
    _
  $region7: #{multi_head_attention.3} parent=0 // pred_check_branch
    %11 = sbr.rel (0) target = $region9
  $region8: #{multi_head_attention.3} parent=0 // pred_region
    _
  $region9: #{multi_head_attention.3} parent=0 // pred_fallthru
    _
  // Predicated region
  $region10: #{multi_head_attention.3} parent=0 // pred_check
    _
  $region11: #{multi_head_attention.3} parent=0 // pred_check_branch
    %13 = sbr.rel (0) target = $region13
  $region12: #{multi_head_attention.3} parent=0 // pred_region
    _
  $region13: #{multi_head_attention.3} parent=0 // pred_fallthru
    _
  %v14 = vld [vmem:[%s0] sm:$0xff]
  %v15 = vld [vmem:[%s0 + $0x8] sm:$0xff]
  %v16 = vld [vmem:[%s0 + $0x10] sm:$0xff]
  %v17 = vld [vmem:[%s0 + $0x18] sm:$0xff]
  %v18 = vld [vmem:[%s1] sm:$0xff]
  %v19 = vld [vmem:[%s1 + $0x8] sm:$0xff]
  %v20 = vld [vmem:[%s1 + $0x10] sm:$0xff]
  %v21 = vld [vmem:[%s1 + $0x18] sm:$0xff]
  %v22 = vld [vmem:[%s2] sm:$0x1]
  %v24 = vlaneseq
  %v25 = vshrl.u32 %v24, 7
  %v26 = vsub.s32 0, %v25
  %v27 = vrot.slane %v22, %v26
  %vm29 = vcmask 261120
  %v31 = vsel %vm29, %v14, 0
  %v34 = vsel %vm29, %v15, 0
  %v37 = vsel %vm29, %v16, 0
  %v40 = vsel %vm29, %v17, 0
  %42 = vmatprep.subr.mxu0 0.0
  %43 = vmatpush1.msra.mxu0 %v18
  %44 = vmatprep.subr.mxu0 0.0
  %45 = vmatpush1.msra.mxu0 %v19
  %46 = vmatprep.subr.mxu0 0.0
  %47 = vmatpush1.msra.mxu0 %v20
  %48 = vmatprep.subr.mxu0 0.0
  %49 = vmatpush1.msra.mxu0 %v21
  %50 = vmatprep.subr.mxu0 0.0
  %51 = vmatpush1.msra.mxu0 0.0
  %52 = vmatprep.subr.mxu0 0.0
  %53 = vmatpush1.msra.mxu0 0.0
  %54 = vmatprep.subr.mxu0 0.0
  %55 = vmatpush1.msra.mxu0 0.0
  %56 = vmatprep.subr.mxu0 0.0
  %57 = vmatpush1.msra.mxu0 0.0
  %58 = vmatprep.subr.mxu0 0.0
  %59 = vmatpush1.msra.mxu0 0.0
  %60 = vmatprep.subr.mxu0 0.0
  %61 = vmatpush1.msra.mxu0 0.0
  %62 = vmatprep.subr.mxu0 0.0
  %63 = vmatpush1.msra.mxu0 0.0
  %64 = vmatprep.subr.mxu0 0.0
  %65 = vmatpush1.msra.mxu0 0.0
  %66 = vmatprep.subr.mxu0 0.0
  %67 = vmatpush1.msra.mxu0 0.0
  %68 = vmatprep.subr.mxu0 0.0
  %69 = vmatpush1.msra.mxu0 0.0
  %70 = vmatprep.subr.mxu0 0.0
  %71 = vmatpush1.msra.mxu0 0.0
  %72 = vmatprep.subr.mxu0 0.0
  %73 = vmatpush1.msra.mxu0 0.0
  %74 = vmatprep.subr.mxu0 0.0
  %75 = vmatpush1.msra.mxu0 0.0
  %76 = vmatprep.subr.mxu0 0.0
  %77 = vmatpush1.msra.mxu0 0.0
  %78 = vmatprep.subr.mxu0 0.0
  %79 = vmatpush1.msra.mxu0 0.0
  %80 = vmatprep.subr.mxu0 0.0
  %81 = vmatpush1.msra.mxu0 0.0
  %82 = vmatprep.subr.mxu0 0.0
  %83 = vmatpush1.msra.mxu0 0.0
  %84 = vmatprep.subr.mxu0 0.0
  %85 = vmatpush1.msra.mxu0 0.0
  %86 = vmatprep.subr.mxu0 0.0
  %87 = vmatpush1.msra.mxu0 0.0
  %88 = vmatprep.subr.mxu0 0.0
  %89 = vmatpush1.msra.mxu0 0.0
  %90 = vmatprep.subr.mxu0 0.0
  %91 = vmatpush1.msra.mxu0 0.0
  %92 = vmatprep.subr.mxu0 0.0
  %93 = vmatpush1.msra.mxu0 0.0
  %94 = vmatprep.subr.mxu0 0.0
  %95 = vmatpush1.msra.mxu0 0.0
  %96 = vmatprep.subr.mxu0 0.0
  %97 = vmatpush1.msra.mxu0 0.0
  %98 = vmatprep.subr.mxu0 0.0
  %99 = vmatpush1.msra.mxu0 0.0
  %100 = vmatprep.subr.mxu0 0.0
  %101 = vmatpush1.msra.mxu0 0.0
  %102 = vmatprep.subr.mxu0 0.0
  %103 = vmatpush1.msra.mxu0 0.0
  %104 = vmatprep.subr.mxu0 0.0
  %105 = vmatpush1.msra.mxu0 0.0
  %106 = vmatprep.mubr.f32.mxu0 0.0
  %107 = vmatmul.mubr.f32.gmra.mrb[0].mxu0 %v31
  %v108 = vpop.f32.mrb[0].mxu0
  %v109 = vadd.f32 %v27, %v108
  %v110 = vpop.f32.mrb[0].mxu0
  %111 = vmatprep.mubr.f32.mxu0 0.0
  %112 = vmatmul.mubr.f32.gmra.mrb[0].mxu0 %v34
  %v113 = vpop.f32.mrb[0].mxu0
  %v114 = vadd.f32 %v27, %v113
  %v115 = vpop.f32.mrb[0].mxu0
  %116 = vmatprep.mubr.f32.mxu0 0.0
  %117 = vmatmul.mubr.f32.gmra.mrb[0].mxu0 %v37
  %v118 = vpop.f32.mrb[0].mxu0
  %v119 = vadd.f32 %v27, %v118
  %v120 = vpop.f32.mrb[0].mxu0
  %121 = vmatprep.mubr.f32.mxu0 0.0
  %122 = vmatmul.mubr.f32.gmra.mrb[0].mxu0 %v40
  %v123 = vpop.f32.mrb[0].mxu0
  %v124 = vadd.f32 %v27, %v123
  %v125 = vpop.f32.mrb[0].mxu0
  %126 = vdwg.mxu0
  %vm127 = vcmask 785408
  %128 = vst.msk [vmem:[%s3] sm:$0xff] %vm127, %v109
  %129 = vst.msk [vmem:[%s3 + $0x8] sm:$0xff] %vm127, %v114
  %130 = vst.msk [vmem:[%s3 + $0x10] sm:$0xff] %vm127, %v119
  %131 = vst.msk [vmem:[%s3 + $0x18] sm:$0xff] %vm127, %v124
  // Predicated region
  $region14: #{multi_head_attention.3} parent=0 // pred_check
    _
  $region15: #{multi_head_attention.3} parent=0 // pred_check_branch
    %133 = sbr.rel (0) target = $region17
  $region16: #{multi_head_attention.3} parent=0 // pred_region
    _
  $region17: #{multi_head_attention.3} parent=0 // pred_fallthru
    _
  // Predicated region
  $region18: #{multi_head_attention.3} parent=0 // pred_check
    _
  $region19: #{multi_head_attention.3} parent=0 // pred_check_branch
    %135 = sbr.rel (0) target = $region21
  $region20: #{multi_head_attention.3} parent=0 // pred_region
    _
  $region21: #{multi_head_attention.3} parent=0 // pred_fallthru
    _

// kernel: multi_head_attention.5
$region0: #{multi_head_attention.5}
  #allocation0 [shape = 'u32[]', space=smem, size = 0x4, offset = 0x4, fixed_abs, tag = 'smem constant byte address 0x4 - core index']
  #allocation1 [shape = 'u32[144,128]{1,0:T(1,128)}', space=vmem, size = 0x12000, scoped, tag = 'internal scratch']
  %s0 = inlined_call_operand.vmem [shape: f32[32,32], index: 0, kind: input, shape index: {}]
  %s1 = inlined_call_operand.vmem [shape: f32[32,32], index: 1, kind: input, shape index: {}]
  %s2 = inlined_call_operand.vmem [shape: f32[1,32], index: 2, kind: input, shape index: {}]
  %s3 = inlined_call_operand.hbm [shape: f32[32,32], index: 3, kind: output, shape index: {}]
  %s4 = sld [smem:[#allocation0]]
  $region22: #{multi_head_attention.5} parent=0
    _
  %s6 = ssub.s32 1, %s4
  %s7 = scalar_select 0, %s6, %s4
  $region1: #{multi_head_attention.5} parent=0
    #allocation2 [shape = 'u8[16384]{0}', space=vmem, size = 0x4000, scoped, tag = 'output window, operand 0, single buffered']
    #allocation3 [shape = 's32[1]{0}', space=sflag, size = 0x4, scoped, tag = 'scoped memory for multi_head_attention.5']
    %8 = vsyncpa [#allocation3], 0
    // Predicated region
    $region2: #{multi_head_attention.5} parent=1 // pred_check
      _
    $region3: #{multi_head_attention.5} parent=1 // pred_check_branch
      %10 = sbr.rel (0) target = $region5
    $region4: #{multi_head_attention.5} parent=1 // pred_region
      _
    $region5: #{multi_head_attention.5} parent=1 // pred_fallthru
      _
    // Predicated region
    $region6: #{multi_head_attention.5} parent=1 // pred_check
      _
    $region7: #{multi_head_attention.5} parent=1 // pred_check_branch
      %12 = sbr.rel (0) target = $region9
    $region8: #{multi_head_attention.5} parent=1 // pred_region
      _
    $region9: #{multi_head_attention.5} parent=1 // pred_fallthru
      _
    // Predicated region
    $region10: #{multi_head_attention.5} parent=1 // pred_check
      _
    $region11: #{multi_head_attention.5} parent=1 // pred_check_branch
      %14 = sbr.rel (0) target = $region13
    $region12: #{multi_head_attention.5} parent=1 // pred_region
      _
    $region13: #{multi_head_attention.5} parent=1 // pred_fallthru
      _
    %v15 = vld [vmem:[%s0] sm:$0xff]
    %v16 = vld [vmem:[%s0 + $0x8] sm:$0xff]
    %v17 = vld [vmem:[%s0 + $0x10] sm:$0xff]
    %v18 = vld [vmem:[%s0 + $0x18] sm:$0xff]
    %v19 = vld [vmem:[%s1] sm:$0xff]
    %v20 = vld [vmem:[%s1 + $0x8] sm:$0xff]
    %v21 = vld [vmem:[%s1 + $0x10] sm:$0xff]
    %v22 = vld [vmem:[%s1 + $0x18] sm:$0xff]
    %v23 = vld [vmem:[%s2] sm:$0x1]
    %v25 = vlaneseq
    %v26 = vshrl.u32 %v25, 7
    %v27 = vsub.s32 0, %v26
    %v28 = vrot.slane %v23, %v27
    %vm30 = vcmask 261120
    %v32 = vsel %vm30, %v15, 0
    %v35 = vsel %vm30, %v16, 0
    %v38 = vsel %vm30, %v17, 0
    %v41 = vsel %vm30, %v18, 0
    %43 = vmatprep.subr.mxu0 0.0
    %44 = vmatpush1.msra.mxu0 %v19
    %45 = vmatprep.subr.mxu0 0.0
    %46 = vmatpush1.msra.mxu0 %v20
    %47 = vmatprep.subr.mxu0 0.0
    %48 = vmatpush1.msra.mxu0 %v21
    %49 = vmatprep.subr.mxu0 0.0
    %50 = vmatpush1.msra.mxu0 %v22
    %51 = vmatprep.subr.mxu0 0.0
    %52 = vmatpush1.msra.mxu0 0.0
    %53 = vmatprep.subr.mxu0 0.0
    %54 = vmatpush1.msra.mxu0 0.0
    %55 = vmatprep.subr.mxu0 0.0
    %56 = vmatpush1.msra.mxu0 0.0
    %57 = vmatprep.subr.mxu0 0.0
    %58 = vmatpush1.msra.mxu0 0.0
    %59 = vmatprep.subr.mxu0 0.0
    %60 = vmatpush1.msra.mxu0 0.0
    %61 = vmatprep.subr.mxu0 0.0
    %62 = vmatpush1.msra.mxu0 0.0
    %63 = vmatprep.subr.mxu0 0.0
    %64 = vmatpush1.msra.mxu0 0.0
    %65 = vmatprep.subr.mxu0 0.0
    %66 = vmatpush1.msra.mxu0 0.0
    %67 = vmatprep.subr.mxu0 0.0
    %68 = vmatpush1.msra.mxu0 0.0
    %69 = vmatprep.subr.mxu0 0.0
    %70 = vmatpush1.msra.mxu0 0.0
    %71 = vmatprep.subr.mxu0 0.0
    %72 = vmatpush1.msra.mxu0 0.0
    %73 = vmatprep.subr.mxu0 0.0
    %74 = vmatpush1.msra.mxu0 0.0
    %75 = vmatprep.subr.mxu0 0.0
    %76 = vmatpush1.msra.mxu0 0.0
    %77 = vmatprep.subr.mxu0 0.0
    %78 = vmatpush1.msra.mxu0 0.0
    %79 = vmatprep.subr.mxu0 0.0
    %80 = vmatpush1.msra.mxu0 0.0
    %81 = vmatprep.subr.mxu0 0.0
    %82 = vmatpush1.msra.mxu0 0.0
    %83 = vmatprep.subr.mxu0 0.0
    %84 = vmatpush1.msra.mxu0 0.0
    %85 = vmatprep.subr.mxu0 0.0
    %86 = vmatpush1.msra.mxu0 0.0
    %87 = vmatprep.subr.mxu0 0.0
    %88 = vmatpush1.msra.mxu0 0.0
    %89 = vmatprep.subr.mxu0 0.0
    %90 = vmatpush1.msra.mxu0 0.0
    %91 = vmatprep.subr.mxu0 0.0
    %92 = vmatpush1.msra.mxu0 0.0
    %93 = vmatprep.subr.mxu0 0.0
    %94 = vmatpush1.msra.mxu0 0.0
    %95 = vmatprep.subr.mxu0 0.0
    %96 = vmatpush1.msra.mxu0 0.0
    %97 = vmatprep.subr.mxu0 0.0
    %98 = vmatpush1.msra.mxu0 0.0
    %99 = vmatprep.subr.mxu0 0.0
    %100 = vmatpush1.msra.mxu0 0.0
    %101 = vmatprep.subr.mxu0 0.0
    %102 = vmatpush1.msra.mxu0 0.0
    %103 = vmatprep.subr.mxu0 0.0
    %104 = vmatpush1.msra.mxu0 0.0
    %105 = vmatprep.subr.mxu0 0.0
    %106 = vmatpush1.msra.mxu0 0.0
    %107 = vmatprep.mubr.f32.mxu0 0.0
    %108 = vmatmul.mubr.f32.gmra.mrb[0].mxu0 %v32
    %v109 = vpop.f32.mrb[0].mxu0
    %v110 = vadd.f32 %v28, %v109
    %v111 = vpop.f32.mrb[0].mxu0
    %112 = vmatprep.mubr.f32.mxu0 0.0
    %113 = vmatmul.mubr.f32.gmra.mrb[0].mxu0 %v35
    %v114 = vpop.f32.mrb[0].mxu0
    %v115 = vadd.f32 %v28, %v114
    %v116 = vpop.f32.mrb[0].mxu0
    %117 = vmatprep.mubr.f32.mxu0 0.0
    %118 = vmatmul.mubr.f32.gmra.mrb[0].mxu0 %v38
    %v119 = vpop.f32.mrb[0].mxu0
    %v120 = vadd.f32 %v28, %v119
    %v121 = vpop.f32.mrb[0].mxu0
    %122 = vmatprep.mubr.f32.mxu0 0.0
    %123 = vmatmul.mubr.f32.gmra.mrb[0].mxu0 %v41
    %v124 = vpop.f32.mrb[0].mxu0
    %v125 = vadd.f32 %v28, %v124
    %v126 = vpop.f32.mrb[0].mxu0
    %127 = vdwg.mxu0
    %128 = vst.msk [vmem:[#allocation2] sm:$0xff] %vm30, %v110
    %129 = vst.msk [vmem:[#allocation2 + $0x8] sm:$0xff] %vm30, %v115
    %130 = vst.msk [vmem:[#allocation2 + $0x10] sm:$0xff] %vm30, %v120
    %131 = vst.msk [vmem:[#allocation2 + $0x18] sm:$0xff] %vm30, %v125
    // Predicated region
    $region14: #{multi_head_attention.5} parent=1 // pred_check
      _
    $region15: #{multi_head_attention.5} parent=1 // pred_check_branch
      %133 = sbr.rel (0) target = $region17
    $region16: #{multi_head_attention.5} parent=1 // pred_region
      %s135 = ssub.s32 512, 512
      %136 = vsyncadd [#allocation3], %s135
      %s137 = sshll.u32 [#allocation2], 4
      %s138 = int_to_ptr.vmem [resolvable:$true] %s137
      %143 = dma.vmem_to_hbm [thread:$0]  %s138, 512, %s3, [#allocation3], 128, 128, 8
    $region17: #{multi_head_attention.5} parent=1 // pred_fallthru
      _
    // Predicated region
    $region18: #{multi_head_attention.5} parent=1 // pred_check
      _
    $region19: #{multi_head_attention.5} parent=1 // pred_check_branch
      %145 = sbr.rel (0) target = $region21
    $region20: #{multi_head_attention.5} parent=1 // pred_region
      %146 = dma.done [#allocation3], 512
    $region21: #{multi_head_attention.5} parent=1 // pred_fallthru
      _
    %147 = vsyncpa [#allocation3], 1

// kernel: multi_head_attention.4
$region0: #{multi_head_attention.4}
  #allocation0 [shape = 'u32[]', space=smem, size = 0x4, offset = 0x4, fixed_abs, tag = 'smem constant byte address 0x4 - core index']
  #allocation1 [shape = 'u32[144,128]{1,0:T(1,128)}', space=vmem, size = 0x12000, scoped, tag = 'internal scratch']
  #allocation2 [shape = 'f32[16,1]{1,0:T(8,128)}', space=vmem, size = 0x2000, scoped, tag = 'scratch operand']
  #allocation3 [shape = 'f32[16,1]{1,0:T(8,128)}', space=vmem, size = 0x2000, scoped, tag = 'scratch operand']
  #allocation4 [shape = 'f32[16,8]{1,0:T(8,128)}', space=vmem, size = 0x2000, scoped, tag = 'scratch operand']
  %s0 = inlined_call_operand.vmem [shape: f32[8,16,8], index: 0, kind: input, shape index: {}]
  %s1 = inlined_call_operand.vmem [shape: f32[8,16,8], index: 1, kind: input, shape index: {}]
  %s2 = inlined_call_operand.vmem [shape: f32[8,16,8], index: 2, kind: input, shape index: {}]
  %s3 = inlined_call_operand.vmem [shape: f32[8,16,8], index: 3, kind: output, shape index: {}]
  %s4 = sld [smem:[#allocation0]]
  $region53: #{multi_head_attention.4} parent=0
    _
  %s6 = ssub.s32 1, %s4
  %s7 = scalar_select 0, %s6, %s4
  loop: start=0, step=1, limit=10
  $region2: #{multi_head_attention.4} parent=0 // loop_pre_header
    _
  $region3: #{multi_head_attention.4} parent=0 // loop_header
    %s9 = sphi 0, %s13
    %p10 = scmp.ge.s32.totalorder %s9, 10
    %s16 = sphi 0, %s35
    %s17 = sphi 0, %s31
    %s18 = sphi 0, %s27
    %s19 = sphi 0, %s16
    %s20 = sphi 0, %s17
    %s21 = sphi 0, %s18
    %s22 = sphi 0, %s19
    %s23 = sphi 0, %s20
    %s24 = sphi 0, %s21
    %s40 = sphi 0, %s42
    %s43 = sphi 0, %s40
    %s44 = sphi 0, %s43
    %s60 = sphi 0, %s44
    %s68 = sphi 0, %s70
    %s71 = sphi 0, %s68
    %s72 = sphi 0, %s71
    %s88 = sphi 0, %s72
    %s96 = sphi 0, %s98
    %s99 = sphi 0, %s96
    %s100 = sphi 0, %s99
    %s116 = sphi 0, %s100
    %s124 = sphi 0, %s126
    %s127 = sphi 0, %s124
    %s128 = sphi 0, %s127
    %s144 = sphi 0, %s128
  $region4: #{multi_head_attention.4} parent=0 // loop_header_branch
    %12 = sbr.rel (%p10) target = $region8
  $region5: #{multi_head_attention.4} parent=0 // loop_body
    %s14 = ssub.s32 %s9, 1
    %s15 = ssub.s32 %s9, 2
    %s25 = sadd.s32 1, %s18
    %p26 = scmp.ge.s32.totalorder %s25, 1
    %s27 = scalar_select %p26, 0, %s25
    %s28 = sadd.s32 1, %s17
    %s29 = scalar_select %p26, %s28, %s17
    %p30 = scmp.ge.s32.totalorder %s29, 1
    %s31 = scalar_select %p30, 0, %s29
    %s32 = sadd.s32 1, %s16
    %s33 = scalar_select %p30, %s32, %s16
    %p34 = scmp.ge.s32.totalorder %s33, 8
    %s35 = scalar_select %p34, 0, %s33
    %s36 = ssub.s32 %s16, %s35
    %s37 = ssub.s32 %s17, %s31
    %s38 = sor.u32 %s36, %s37
    %p39 = scmp.eq.s32.totalorder %s38, 0
    %s41 = sadd.s32 %s40, 1
    %s42 = scalar_select %p39, %s40, %s41
    %p45 = pneg %p39
    %p46 = scmp.eq.s32.totalorder %s9, 7
    %p47 = por %p45, %p46
    %p48 = scmp.ne.s32.totalorder %s40, %s43
    %p49 = scmp.eq.s32.totalorder %s9, 0
    %p50 = por %p48, %p49
    %p51 = scmp.ne.s32.totalorder %s40, %s43
    %p52 = scmp.eq.s32.totalorder %s14, 7
    %p53 = por %p51, %p52
    %p54 = scmp.ne.s32.totalorder %s43, %s44
    %p55 = scmp.eq.s32.totalorder %s14, 0
    %p56 = por %p54, %p55
    %p57 = scmp.ne.s32.totalorder %s43, %s44
    %p58 = scmp.eq.s32.totalorder %s15, 7
    %p59 = por %p57, %p58
    %p61 = scmp.ne.s32.totalorder %s44, %s60
    %p62 = scmp.eq.s32.totalorder %s15, 0
    %p63 = por %p61, %p62
    %s64 = ssub.s32 %s16, %s35
    %s65 = ssub.s32 %s18, %s27
    %s66 = sor.u32 %s64, %s65
    %p67 = scmp.eq.s32.totalorder %s66, 0
    %s69 = sadd.s32 %s68, 1
    %s70 = scalar_select %p67, %s68, %s69
    %p73 = pneg %p67
    %p74 = scmp.eq.s32.totalorder %s9, 7
    %p75 = por %p73, %p74
    %p76 = scmp.ne.s32.totalorder %s68, %s71
    %p77 = scmp.eq.s32.totalorder %s9, 0
    %p78 = por %p76, %p77
    %p79 = scmp.ne.s32.totalorder %s68, %s71
    %p80 = scmp.eq.s32.totalorder %s14, 7
    %p81 = por %p79, %p80
    %p82 = scmp.ne.s32.totalorder %s71, %s72
    %p83 = scmp.eq.s32.totalorder %s14, 0
    %p84 = por %p82, %p83
    %p85 = scmp.ne.s32.totalorder %s71, %s72
    %p86 = scmp.eq.s32.totalorder %s15, 7
    %p87 = por %p85, %p86
    %p89 = scmp.ne.s32.totalorder %s72, %s88
    %p90 = scmp.eq.s32.totalorder %s15, 0
    %p91 = por %p89, %p90
    %s92 = ssub.s32 %s16, %s35
    %s93 = ssub.s32 %s18, %s27
    %s94 = sor.u32 %s92, %s93
    %p95 = scmp.eq.s32.totalorder %s94, 0
    %s97 = sadd.s32 %s96, 1
    %s98 = scalar_select %p95, %s96, %s97
    %p101 = pneg %p95
    %p102 = scmp.eq.s32.totalorder %s9, 7
    %p103 = por %p101, %p102
    %p104 = scmp.ne.s32.totalorder %s96, %s99
    %p105 = scmp.eq.s32.totalorder %s9, 0
    %p106 = por %p104, %p105
    %p107 = scmp.ne.s32.totalorder %s96, %s99
    %p108 = scmp.eq.s32.totalorder %s14, 7
    %p109 = por %p107, %p108
    %p110 = scmp.ne.s32.totalorder %s99, %s100
    %p111 = scmp.eq.s32.totalorder %s14, 0
    %p112 = por %p110, %p111
    %p113 = scmp.ne.s32.totalorder %s99, %s100
    %p114 = scmp.eq.s32.totalorder %s15, 7
    %p115 = por %p113, %p114
    %p117 = scmp.ne.s32.totalorder %s100, %s116
    %p118 = scmp.eq.s32.totalorder %s15, 0
    %p119 = por %p117, %p118
    %s120 = ssub.s32 %s16, %s35
    %s121 = ssub.s32 %s17, %s31
    %s122 = sor.u32 %s120, %s121
    %p123 = scmp.eq.s32.totalorder %s122, 0
    %s125 = sadd.s32 %s124, 1
    %s126 = scalar_select %p123, %s124, %s125
    %p129 = pneg %p123
    %p130 = scmp.eq.s32.totalorder %s9, 7
    %p131 = por %p129, %p130
    %p132 = scmp.ne.s32.totalorder %s124, %s127
    %p133 = scmp.eq.s32.totalorder %s9, 0
    %p134 = por %p132, %p133
    %p135 = scmp.ne.s32.totalorder %s124, %s127
    %p136 = scmp.eq.s32.totalorder %s14, 7
    %p137 = por %p135, %p136
    %p138 = scmp.ne.s32.totalorder %s127, %s128
    %p139 = scmp.eq.s32.totalorder %s14, 0
    %p140 = por %p138, %p139
    %p141 = scmp.ne.s32.totalorder %s127, %s128
    %p142 = scmp.eq.s32.totalorder %s15, 7
    %p143 = por %p141, %p142
    %p145 = scmp.ne.s32.totalorder %s128, %s144
    %p146 = scmp.eq.s32.totalorder %s15, 0
    %p147 = por %p145, %p146
    %p148 = scmp.le.s32.totalorder 1, %s9
    %p149 = scmp.lt.s32.totalorder %s9, 9
    %p150 = pnand %p148, %p149
    %p151 = pneg %p150
    // Predicated region
    $region9: #{multi_head_attention.4} parent=5 // pred_check
      _
    $region10: #{multi_head_attention.4} parent=5 // pred_check_branch
      %153 = sbr.rel (%p150) target = $region12
    $region11: #{multi_head_attention.4} parent=5 // pred_region
      %s154 = ssub.s32 %s9, 1
    $region12: #{multi_head_attention.4} parent=5 // pred_fallthru
      _
    %p155 = scmp.lt.s32.totalorder %s9, 8
    // Predicated region
    $region13: #{multi_head_attention.4} parent=5 // pred_check
      %p156 = pneg %p155
    $region14: #{multi_head_attention.4} parent=5 // pred_check_branch
      %158 = sbr.rel (%p156) target = $region16
    $region15: #{multi_head_attention.4} parent=5 // pred_region
      // Predicated region
      $region17: #{multi_head_attention.4} parent=15 // pred_check
        %p159 = pneg %p50
      $region18: #{multi_head_attention.4} parent=15 // pred_check_branch
        %161 = sbr.rel (%p159) target = $region20
      $region19: #{multi_head_attention.4} parent=15 // pred_region
        %s162 = smul.u32 2, %s17
        %p163 = scmp.lt.s32.totalorder %s16, 7
        %s164 = scalar_select %p163, %s16, 7
        %p165 = scmp.lt.s32.totalorder %s162, 1
        %s166 = scalar_select %p165, %s162, 1
        %s167 = smul.addr %s164, 2
        %s168 = sadd.s32 %s166, %s167
        %s169 = smul.addr %s168, 8
        %s170 = scalar_lea.vmem %s0, %s169
        %s171 = smul.u32 2, %s17
      $region20: #{multi_head_attention.4} parent=15 // pred_fallthru
        _
      // Predicated region
      $region21: #{multi_head_attention.4} parent=15 // pred_check
        %p172 = pneg %p78
      $region22: #{multi_head_attention.4} parent=15 // pred_check_branch
        %174 = sbr.rel (%p172) target = $region24
      $region23: #{multi_head_attention.4} parent=15 // pred_region
        %s175 = smul.u32 2, %s18
        %p176 = scmp.lt.s32.totalorder %s16, 7
        %s177 = scalar_select %p176, %s16, 7
        %p178 = scmp.lt.s32.totalorder %s175, 1
        %s179 = scalar_select %p178, %s175, 1
        %s180 = smul.addr %s177, 2
        %s181 = sadd.s32 %s179, %s180
        %s182 = smul.addr %s181, 8
        %s183 = scalar_lea.vmem %s1, %s182
        %s184 = smul.u32 2, %s18
      $region24: #{multi_head_attention.4} parent=15 // pred_fallthru
        _
      // Predicated region
      $region25: #{multi_head_attention.4} parent=15 // pred_check
        %p185 = pneg %p106
      $region26: #{multi_head_attention.4} parent=15 // pred_check_branch
        %187 = sbr.rel (%p185) target = $region28
      $region27: #{multi_head_attention.4} parent=15 // pred_region
        %s188 = smul.u32 2, %s18
        %p189 = scmp.lt.s32.totalorder %s16, 7
        %s190 = scalar_select %p189, %s16, 7
        %p191 = scmp.lt.s32.totalorder %s188, 1
        %s192 = scalar_select %p191, %s188, 1
        %s193 = smul.addr %s190, 2
        %s194 = sadd.s32 %s192, %s193
        %s195 = smul.addr %s194, 8
        %s196 = scalar_lea.vmem %s2, %s195
        %s197 = smul.u32 2, %s18
      $region28: #{multi_head_attention.4} parent=15 // pred_fallthru
        _
    $region16: #{multi_head_attention.4} parent=5 // pred_fallthru
      _
    %p198 = scmp.le.s32.totalorder 1, %s9
    %p199 = scmp.lt.s32.totalorder %s9, 9
    %p200 = pnand %p198, %p199
    %p201 = pneg %p200
    // Predicated region
    $region29: #{multi_head_attention.4} parent=5 // pred_check
      _
    $region30: #{multi_head_attention.4} parent=5 // pred_check_branch
      %203 = sbr.rel (%p200) target = $region32
    $region31: #{multi_head_attention.4} parent=5 // pred_region
      %s204 = ssub.s32 %s9, 1
      %s205 = smul.u32 2, %s20
      %p206 = scmp.lt.s32.totalorder %s19, 7
      %s207 = scalar_select %p206, %s19, 7
      %p208 = scmp.lt.s32.totalorder %s205, 1
      %s209 = scalar_select %p208, %s205, 1
      %s210 = smul.addr %s207, 2
      %s211 = sadd.s32 %s209, %s210
      %s212 = smul.addr %s211, 8
      %s213 = scalar_lea.vmem %s0, %s212
      %p214 = pneg %p56
      %p215 = pneg %p53
      %s216 = smul.u32 2, %s21
      %p217 = scmp.lt.s32.totalorder %s19, 7
      %s218 = scalar_select %p217, %s19, 7
      %p219 = scmp.lt.s32.totalorder %s216, 1
      %s220 = scalar_select %p219, %s216, 1
      %s221 = smul.addr %s218, 2
      %s222 = sadd.s32 %s220, %s221
      %s223 = smul.addr %s222, 8
      %s224 = scalar_lea.vmem %s1, %s223
      %p225 = pneg %p84
      %p226 = pneg %p81
      %s227 = smul.u32 2, %s21
      %p228 = scmp.lt.s32.totalorder %s19, 7
      %s229 = scalar_select %p228, %s19, 7
      %p230 = scmp.lt.s32.totalorder %s227, 1
      %s231 = scalar_select %p230, %s227, 1
      %s232 = smul.addr %s229, 2
      %s233 = sadd.s32 %s231, %s232
      %s234 = smul.addr %s233, 8
      %s235 = scalar_lea.vmem %s2, %s234
      %p236 = pneg %p112
      %p237 = pneg %p109
      %p238 = pneg %p140
      %p239 = pneg %p137
      %s240 = smul.u32 2, %s20
      %p241 = scmp.lt.s32.totalorder %s19, 7
      %s242 = scalar_select %p241, %s19, 7
      %p243 = scmp.lt.s32.totalorder %s240, 1
      %s244 = scalar_select %p243, %s240, 1
      %s245 = smul.addr %s242, 2
      %s246 = sadd.s32 %s244, %s245
      %s247 = smul.addr %s246, 8
      %s248 = scalar_lea.vmem %s3, %s247
      %s249 = smul.u32 2, %s20
      %p250 = scmp.lt.s32.totalorder %s19, 7
      %s251 = scalar_select %p250, %s19, 7
      %p252 = scmp.lt.s32.totalorder %s249, 1
      %s253 = scalar_select %p252, %s249, 1
      %s254 = smul.addr %s251, 2
      %s255 = sadd.s32 %s253, %s254
      %s256 = smul.addr %s255, 8
      %s257 = scalar_lea.vmem %s0, %s256
      %s258 = smul.u32 2, %s20
      %s259 = smul.u32 2, %s21
      %p260 = scmp.lt.s32.totalorder %s19, 7
      %s261 = scalar_select %p260, %s19, 7
      %p262 = scmp.lt.s32.totalorder %s259, 1
      %s263 = scalar_select %p262, %s259, 1
      %s264 = smul.addr %s261, 2
      %s265 = sadd.s32 %s263, %s264
      %s266 = smul.addr %s265, 8
      %s267 = scalar_lea.vmem %s1, %s266
      %s268 = smul.u32 2, %s21
      %s269 = smul.u32 2, %s21
      %p270 = scmp.lt.s32.totalorder %s19, 7
      %s271 = scalar_select %p270, %s19, 7
      %p272 = scmp.lt.s32.totalorder %s269, 1
      %s273 = scalar_select %p272, %s269, 1
      %s274 = smul.addr %s271, 2
      %s275 = sadd.s32 %s273, %s274
      %s276 = smul.addr %s275, 8
      %s277 = scalar_lea.vmem %s2, %s276
      %s278 = smul.u32 2, %s21
      %s279 = smul.u32 2, %s20
      %p280 = scmp.lt.s32.totalorder %s19, 7
      %s281 = scalar_select %p280, %s19, 7
      %p282 = scmp.lt.s32.totalorder %s279, 1
      %s283 = scalar_select %p282, %s279, 1
      %s284 = smul.addr %s281, 2
      %s285 = sadd.s32 %s283, %s284
      %s286 = smul.addr %s285, 8
      %s287 = scalar_lea.vmem %s3, %s286
      %s288 = smul.u32 2, %s20
      %p289 = scmp.eq.s32.totalorder %s21, 0
      // Predicated region
      $region33: #{multi_head_attention.4} parent=31 // pred_check
        %p290 = pneg %p289
      $region34: #{multi_head_attention.4} parent=31 // pred_check_branch
        %292 = sbr.rel (%p290) target = $region36
      $region35: #{multi_head_attention.4} parent=31 // pred_region
        %vm293 = vcmask 7168
        %294 = vst.msk [vmem:[#allocation2] sm:$0xff] %vm293, -inf
        %295 = vst.msk [vmem:[#allocation2 + $0x8] sm:$0xff] %vm293, -inf
        %296 = vst.msk [vmem:[#allocation3] sm:$0xff] %vm293, 0.0
        %297 = vst.msk [vmem:[#allocation3 + $0x8] sm:$0xff] %vm293, 0.0
        %vm298 = vcmask 64512
        %299 = vst.msk [vmem:[#allocation4] sm:$0xff] %vm298, 0.0
        %300 = vst.msk [vmem:[#allocation4 + $0x8] sm:$0xff] %vm298, 0.0
      $region36: #{multi_head_attention.4} parent=31 // pred_fallthru
        _
      %v301 = vld [vmem:[%s257] sm:$0xff]
      %v302 = vld [vmem:[%s257 + $0x8] sm:$0xff]
      %v303 = vld [vmem:[%s267] sm:$0xff]
      %v304 = vld [vmem:[%s267 + $0x8] sm:$0xff]
      %vm305 = vcmask 64512
      %v307 = vsel %vm305, %v301, 0
      %v310 = vsel %vm305, %v302, 0
      %v313 = vsel %vm305, %v303, 0
      %v316 = vsel %vm305, %v304, 0
      %318 = vmatprep.subr.mxu0 0.0
      %319 = vmatpush1.xpose.msra.mxu0 %v313
      %320 = vmatprep.subr.mxu0 0.0
      %321 = vmatpush1.xpose.msra.mxu0 %v316
      %322 = vmatprep.subr.mxu0 0.0
      %323 = vmatpush1.xpose.msra.mxu0 0.0
      %324 = vmatprep.subr.mxu0 0.0
      %325 = vmatpush1.xpose.msra.mxu0 0.0
      %326 = vmatprep.subr.mxu0 0.0
      %327 = vmatpush1.xpose.msra.mxu0 0.0
      %328 = vmatprep.subr.mxu0 0.0
      %329 = vmatpush1.xpose.msra.mxu0 0.0
      %330 = vmatprep.subr.mxu0 0.0
      %331 = vmatpush1.xpose.msra.mxu0 0.0
      %332 = vmatprep.subr.mxu0 0.0
      %333 = vmatpush1.xpose.msra.mxu0 0.0
      %334 = vmatprep.subr.mxu0 0.0
      %335 = vmatpush1.xpose.msra.mxu0 0.0
      %336 = vmatprep.subr.mxu0 0.0
      %337 = vmatpush1.xpose.msra.mxu0 0.0
      %338 = vmatprep.subr.mxu0 0.0
      %339 = vmatpush1.xpose.msra.mxu0 0.0
      %340 = vmatprep.subr.mxu0 0.0
      %341 = vmatpush1.xpose.msra.mxu0 0.0
      %342 = vmatprep.subr.mxu0 0.0
      %343 = vmatpush1.xpose.msra.mxu0 0.0
      %344 = vmatprep.subr.mxu0 0.0
      %345 = vmatpush1.xpose.msra.mxu0 0.0
      %346 = vmatprep.subr.mxu0 0.0
      %347 = vmatpush1.xpose.msra.mxu0 0.0
      %348 = vmatprep.subr.mxu0 0.0
      %349 = vmatpush1.xpose.msra.mxu0 0.0
      %350 = vmatprep.subr.mxu0 0.0
      %351 = vmatpush1.xpose.msra.mxu0 0.0
      %352 = vmatprep.subr.mxu0 0.0
      %353 = vmatpush1.xpose.msra.mxu0 0.0
      %354 = vmatprep.subr.mxu0 0.0
      %355 = vmatpush1.xpose.msra.mxu0 0.0
      %356 = vmatprep.subr.mxu0 0.0
      %357 = vmatpush1.xpose.msra.mxu0 0.0
      %358 = vmatprep.subr.mxu0 0.0
      %359 = vmatpush1.xpose.msra.mxu0 0.0
      %360 = vmatprep.subr.mxu0 0.0
      %361 = vmatpush1.xpose.msra.mxu0 0.0
      %362 = vmatprep.subr.mxu0 0.0
      %363 = vmatpush1.xpose.msra.mxu0 0.0
      %364 = vmatprep.subr.mxu0 0.0
      %365 = vmatpush1.xpose.msra.mxu0 0.0
      %366 = vmatprep.subr.mxu0 0.0
      %367 = vmatpush1.xpose.msra.mxu0 0.0
      %368 = vmatprep.subr.mxu0 0.0
      %369 = vmatpush1.xpose.msra.mxu0 0.0
      %370 = vmatprep.subr.mxu0 0.0
      %371 = vmatpush1.xpose.msra.mxu0 0.0
      %372 = vmatprep.subr.mxu0 0.0
      %373 = vmatpush1.xpose.msra.mxu0 0.0
      %374 = vmatprep.subr.mxu0 0.0
      %375 = vmatpush1.xpose.msra.mxu0 0.0
      %376 = vmatprep.subr.mxu0 0.0
      %377 = vmatpush1.xpose.msra.mxu0 0.0
      %378 = vmatprep.subr.mxu0 0.0
      %379 = vmatpush1.xpose.msra.mxu0 0.0
      %380 = vmatprep.subr.mxu0 0.0
      %381 = vmatpush1.xpose.msra.mxu0 0.0
      %382 = vmatprep.mubr.f32.mxu0 0.0
      %383 = vmatmul.mubr.f32.gmra.mrb[0].mxu0 %v307
      %v384 = vpop.f32.mrb[0].mxu0
      %v385 = vadd.f32 0.0, %v384
      %v386 = vpop.f32.mrb[0].mxu0
      %387 = vmatprep.mubr.f32.mxu0 0.0
      %388 = vmatmul.mubr.f32.gmra.mrb[0].mxu0 %v310
      %v389 = vpop.f32.mrb[0].mxu0
      %v390 = vadd.f32 0.0, %v389
      %v391 = vpop.f32.mrb[0].mxu0
      %392 = vdwg.mxu0
      %v393 = vld [vmem:[#allocation2] sm:$0xff]
      %v394 = vld [vmem:[#allocation2 + $0x8] sm:$0xff]
      %vm395 = vcmask 130048
      %v396 = vsel %vm395, %v385, -inf
      %397 = vmax.xlane.f32.xlu0 %v396
      %v398 = vpop.xlane.xlu0 %397
      %v399 = vsel %vm395, %v390, -inf
      %400 = vmax.xlane.f32.xlu0 %v399
      %v401 = vpop.xlane.xlu0 %400
      %v402 = vmax.f32 %v393, %v398
      %v403 = vmax.f32 %v394, %v401
      %v404 = vsub.f32 %v393, %v402
      %v405 = vsub.f32 %v394, %v403
      %v406 = vmul.f32 %v404, 1.442695
      %v407 = vpow.pop %v406
      %v408 = vmul.f32 %v405, 1.442695
      %v409 = vpow.pop %v408
      %411 = vset.pattern.permute.xlu0 0
      %412 = vperm.xlu0 %411, %v402
      %v413 = vpop.permute.xlu0 %412
      %416 = vset.pattern.permute.xlu0 0
      %417 = vperm.xlu0 %416, %v403
      %v418 = vpop.permute.xlu0 %417
      %v420 = vsub.f32 %v385, %v413
      %v421 = vsub.f32 %v390, %v418
      %v422 = vmul.f32 %v420, 1.442695
      %v423 = vpow.pop %v422
      %v424 = vmul.f32 %v421, 1.442695
      %v425 = vpow.pop %v424
      %v426 = vld [vmem:[#allocation3] sm:$0xff]
      %v427 = vld [vmem:[#allocation3 + $0x8] sm:$0xff]
      %v428 = vmul.f32 %v407, %v426
      %v429 = vmul.f32 %v409, %v427
      %v430 = vsel %vm395, %v423, 0.0
      %431 = vadd.xlane.f32.xlu0 %v430
      %v432 = vpop.xlane.xlu0 %431
      %v433 = vsel %vm395, %v425, 0.0
      %434 = vadd.xlane.f32.xlu0 %v433
      %v435 = vpop.xlane.xlu0 %434
      %v436 = vadd.f32 %v428, %v432
      %v437 = vadd.f32 %v429, %v435
      %vm438 = vcmask 7168
      %439 = vst.msk [vmem:[#allocation3] sm:$0xff] %vm438, %v436
      %440 = vst.msk [vmem:[#allocation3 + $0x8] sm:$0xff] %vm438, %v437
      %v441 = vld [vmem:[#allocation4] sm:$0xff]
      %v442 = vld [vmem:[#allocation4 + $0x8] sm:$0xff]
      %444 = vset.pattern.permute.xlu0 0
      %445 = vperm.xlu0 %444, %v407
      %v446 = vpop.permute.xlu0 %445
      %449 = vset.pattern.permute.xlu0 0
      %450 = vperm.xlu0 %449, %v409
      %v451 = vpop.permute.xlu0 %450
      %v453 = vmul.f32 %v446, %v441
      %v454 = vmul.f32 %v451, %v442
      %v455 = vld [vmem:[%s277] sm:$0xff]
      %v456 = vld [vmem:[%s277 + $0x8] sm:$0xff]
      %v458 = vsel %vm395, %v423, 0
      %v461 = vsel %vm395, %v425, 0
      %463 = vmatprep.subr.mxu0 0.0
      %464 = vmatpush1.msra.mxu0 %v455
      %465 = vmatprep.subr.mxu0 0.0
      %466 = vmatpush1.msra.mxu0 %v456
      %467 = vmatprep.subr.mxu0 0.0
      %468 = vmatpush1.msra.mxu0 0.0
      %469 = vmatprep.subr.mxu0 0.0
      %470 = vmatpush1.msra.mxu0 0.0
      %471 = vmatprep.subr.mxu0 0.0
      %472 = vmatpush1.msra.mxu0 0.0
      %473 = vmatprep.subr.mxu0 0.0
      %474 = vmatpush1.msra.mxu0 0.0
      %475 = vmatprep.subr.mxu0 0.0
      %476 = vmatpush1.msra.mxu0 0.0
      %477 = vmatprep.subr.mxu0 0.0
      %478 = vmatpush1.msra.mxu0 0.0
      %479 = vmatprep.subr.mxu0 0.0
      %480 = vmatpush1.msra.mxu0 0.0
      %481 = vmatprep.subr.mxu0 0.0
      %482 = vmatpush1.msra.mxu0 0.0
      %483 = vmatprep.subr.mxu0 0.0
      %484 = vmatpush1.msra.mxu0 0.0
      %485 = vmatprep.subr.mxu0 0.0
      %486 = vmatpush1.msra.mxu0 0.0
      %487 = vmatprep.subr.mxu0 0.0
      %488 = vmatpush1.msra.mxu0 0.0
      %489 = vmatprep.subr.mxu0 0.0
      %490 = vmatpush1.msra.mxu0 0.0
      %491 = vmatprep.subr.mxu0 0.0
      %492 = vmatpush1.msra.mxu0 0.0
      %493 = vmatprep.subr.mxu0 0.0
      %494 = vmatpush1.msra.mxu0 0.0
      %495 = vmatprep.subr.mxu0 0.0
      %496 = vmatpush1.msra.mxu0 0.0
      %497 = vmatprep.subr.mxu0 0.0
      %498 = vmatpush1.msra.mxu0 0.0
      %499 = vmatprep.subr.mxu0 0.0
      %500 = vmatpush1.msra.mxu0 0.0
      %501 = vmatprep.subr.mxu0 0.0
      %502 = vmatpush1.msra.mxu0 0.0
      %503 = vmatprep.subr.mxu0 0.0
      %504 = vmatpush1.msra.mxu0 0.0
      %505 = vmatprep.subr.mxu0 0.0
      %506 = vmatpush1.msra.mxu0 0.0
      %507 = vmatprep.subr.mxu0 0.0
      %508 = vmatpush1.msra.mxu0 0.0
      %509 = vmatprep.subr.mxu0 0.0
      %510 = vmatpush1.msra.mxu0 0.0
      %511 = vmatprep.subr.mxu0 0.0
      %512 = vmatpush1.msra.mxu0 0.0
      %513 = vmatprep.subr.mxu0 0.0
      %514 = vmatpush1.msra.mxu0 0.0
      %515 = vmatprep.subr.mxu0 0.0
      %516 = vmatpush1.msra.mxu0 0.0
      %517 = vmatprep.subr.mxu0 0.0
      %518 = vmatpush1.msra.mxu0 0.0
      %519 = vmatprep.subr.mxu0 0.0
      %520 = vmatpush1.msra.mxu0 0.0
      %521 = vmatprep.subr.mxu0 0.0
      %522 = vmatpush1.msra.mxu0 0.0
      %523 = vmatprep.subr.mxu0 0.0
      %524 = vmatpush1.msra.mxu0 0.0
      %525 = vmatprep.subr.mxu0 0.0
      %526 = vmatpush1.msra.mxu0 0.0
      %527 = vmatprep.mubr.f32.mxu0 0.0
      %528 = vmatmul.mubr.f32.gmra.mrb[0].mxu0 %v458
      %v529 = vpop.f32.mrb[0].mxu0
      %v530 = vadd.f32 0.0, %v529
      %v531 = vpop.f32.mrb[0].mxu0
      %532 = vmatprep.mubr.f32.mxu0 0.0
      %533 = vmatmul.mubr.f32.gmra.mrb[0].mxu0 %v461
      %v534 = vpop.f32.mrb[0].mxu0
      %v535 = vadd.f32 0.0, %v534
      %v536 = vpop.f32.mrb[0].mxu0
      %537 = vdwg.mxu0
      %v538 = vadd.f32 %v453, %v530
      %v539 = vadd.f32 %v454, %v535
      %540 = vst.msk [vmem:[#allocation4] sm:$0xff] %vm305, %v538
      %541 = vst.msk [vmem:[#allocation4 + $0x8] sm:$0xff] %vm305, %v539
      %542 = vst.msk [vmem:[#allocation2] sm:$0xff] %vm438, %v402
      %543 = vst.msk [vmem:[#allocation2 + $0x8] sm:$0xff] %vm438, %v403
      // Predicated region
      $region37: #{multi_head_attention.4} parent=31 // pred_check
        %p544 = pneg %p289
      $region38: #{multi_head_attention.4} parent=31 // pred_check_branch
        %546 = sbr.rel (%p544) target = $region40
      $region39: #{multi_head_attention.4} parent=31 // pred_region
        %v547 = vld [vmem:[#allocation3] sm:$0xff]
        %v548 = vld [vmem:[#allocation3 + $0x8] sm:$0xff]
        %v549 = vrcp.pop %v547
        %v550 = vrcp.pop %v548
        %v551 = vmul.f32 %v549, 0.17677669
        %v552 = vmul.f32 %v550, 0.17677669
        %v553 = vld [vmem:[#allocation4] sm:$0xff]
        %v554 = vld [vmem:[#allocation4 + $0x8] sm:$0xff]
        %556 = vset.pattern.permute.xlu0 0
        %557 = vperm.xlu0 %556, %v551
        %v558 = vpop.permute.xlu0 %557
        %561 = vset.pattern.permute.xlu0 0
        %562 = vperm.xlu0 %561, %v552
        %v563 = vpop.permute.xlu0 %562
        %v565 = vmul.f32 %v553, %v558
        %v566 = vmul.f32 %v554, %v563
        %567 = vst.msk [vmem:[%s287] sm:$0xff] %vm305, %v565
        %568 = vst.msk [vmem:[%s287 + $0x8] sm:$0xff] %vm305, %v566
      $region40: #{multi_head_attention.4} parent=31 // pred_fallthru
        _
      %s569 = smul.u32 2, %s20
      %p570 = scmp.lt.s32.totalorder %s19, 7
      %s571 = scalar_select %p570, %s19, 7
      %p572 = scmp.lt.s32.totalorder %s569, 1
      %s573 = scalar_select %p572, %s569, 1
      %s574 = smul.addr %s571, 2
      %s575 = sadd.s32 %s573, %s574
      %s576 = smul.addr %s575, 8
      %s577 = scalar_lea.vmem %s3, %s576
      // Predicated region
      $region41: #{multi_head_attention.4} parent=31 // pred_check
        %p578 = pneg %p137
      $region42: #{multi_head_attention.4} parent=31 // pred_check_branch
        %580 = sbr.rel (%p578) target = $region44
      $region43: #{multi_head_attention.4} parent=31 // pred_region
        %s581 = smul.u32 2, %s20
      $region44: #{multi_head_attention.4} parent=31 // pred_fallthru
        _
    $region32: #{multi_head_attention.4} parent=5 // pred_fallthru
      _
    %p582 = scmp.le.s32.totalorder 2, %s9
    // Predicated region
    $region45: #{multi_head_attention.4} parent=5 // pred_check
      %p583 = pneg %p582
    $region46: #{multi_head_attention.4} parent=5 // pred_check_branch
      %585 = sbr.rel (%p583) target = $region48
    $region47: #{multi_head_attention.4} parent=5 // pred_region
      %s586 = ssub.s32 %s9, 2
      // Predicated region
      $region49: #{multi_head_attention.4} parent=47 // pred_check
        %p587 = pneg %p143
      $region50: #{multi_head_attention.4} parent=47 // pred_check_branch
        %589 = sbr.rel (%p587) target = $region52
      $region51: #{multi_head_attention.4} parent=47 // pred_region
        %s590 = smul.u32 2, %s23
        %p591 = scmp.lt.s32.totalorder %s22, 7
        %s592 = scalar_select %p591, %s22, 7
        %p593 = scmp.lt.s32.totalorder %s590, 1
        %s594 = scalar_select %p593, %s590, 1
        %s595 = smul.addr %s592, 2
        %s596 = sadd.s32 %s594, %s595
        %s597 = smul.addr %s596, 8
        %s598 = scalar_lea.vmem %s3, %s597
      $region52: #{multi_head_attention.4} parent=47 // pred_fallthru
        _
    $region48: #{multi_head_attention.4} parent=5 // pred_fallthru
      _
  $region6: #{multi_head_attention.4} parent=0 // loop_footer
    %s13 = sadd.s32 1, %s9
  $region7: #{multi_head_attention.4} parent=0 // loop_footer_branch
    %8 = sbr.rel target = $region3
  $region8: #{multi_head_attention.4} parent=0 // loop_exit
    _

</llo_original>
